<compile_context>
chip_gen: v6e
topology: v6e:2x2x1
jax: 0.10.0
libtpu: 0.0.40
codegen_flags: <defaults>
</compile_context>

<pallas_src>
import math

import jax
import jax.numpy as jnp
from jax.experimental import pallas as pl
from jax.experimental.pallas import tpu as pltpu


def build_rotary_table(rotary_dim: int, rotary_base: int = 10000,
                       max_position: int = 16384) -> jnp.ndarray:
    """Reference: the frozen nn.Embedding weight from the module's __init__."""
    inv_freq = 1.0 / (rotary_base ** (
        jnp.arange(0, rotary_dim, 2, dtype=jnp.float32) / rotary_dim))
    t = jnp.arange(max_position, dtype=jnp.float32)
    freqs = jnp.einsum("i,j->ij", t, inv_freq)            # (max_position, rotary_dim//2)
    return jnp.concatenate([jnp.sin(freqs), jnp.cos(freqs)], axis=-1)


def _rotary_kernel(ids_ref, invfreq_mask_ref, phase_ref, out_ref):
    # ids_ref:          (Tr, tpr)  int32  VMEM   -- tpr tokens packed per row
    # invfreq_mask_ref: (tpr, W)   f32    VMEM   -- row t: inv_freq (dup'd) in
    #                                               token-t lanes, 0 elsewhere
    # phase_ref:        (1, W)     f32    VMEM   -- 0 for sin lanes, pi/2 for cos
    # out_ref:          (Tr, W)    f32    VMEM   -- lane-dense output block
    tpr = ids_ref.shape[1]
    pos = ids_ref[...].astype(jnp.float32)                  # (Tr, tpr)
    ivm = invfreq_mask_ref[...]                              # (tpr, W)
    acc = phase_ref[...]                                     # (1, W) -> broadcasts
    for t in range(tpr):                                     # static unroll, tpr small
        acc = acc + pos[:, t:t + 1] * ivm[t:t + 1, :]        # (Tr,1)*(1,W) -> (Tr,W)
    out_ref[...] = jnp.sin(acc)                              # cos(x) == sin(x + pi/2)


def rotary_positional_embedding(position_ids: jnp.ndarray,
                                rotary_dim: int,
                                rotary_base: int = 10000,
                                tile_rows: int = 2048) -> jnp.ndarray:
    """Equivalent of FixedRotaryPositionalEmbedding.forward(position_ids)."""
    assert rotary_dim % 2 == 0, "rotary_dim must be even"
    orig_shape = position_ids.shape
    ids_flat = position_ids.reshape(-1).astype(jnp.int32)
    n = ids_flat.shape[0]

    # Lane-dense packing: W lanes per row, tpr tokens per row.
    if rotary_dim % 128 == 0:
        lane_w, tpr = rotary_dim, 1
    elif 128 % rotary_dim == 0:
        lane_w, tpr = 128, 128 // rotary_dim
    else:
        lane_w, tpr = rotary_dim, 1          # fallback: lane-padded layout

    n_rows = pl.cdiv(n, tpr)
    # Rows per grid step: big enough that each step's output block is ~1 MiB
    # (amortizes per-step overhead), clamped (multiple of 8 sublanes) for tiny n.
    tile_rows = max(8, min(tile_rows, pl.cdiv(n_rows, 8) * 8))
    n_rows_pad = pl.cdiv(n_rows, tile_rows) * tile_rows
    n_pad = n_rows_pad * tpr
    ids_packed = jnp.pad(ids_flat, (0, n_pad - n)).reshape(n_rows_pad, tpr)

    half = rotary_dim // 2
    inv_freq = 1.0 / (rotary_base ** (
        jnp.arange(0, rotary_dim, 2, dtype=jnp.float32) / rotary_dim))
    inv_freq2 = jnp.concatenate([inv_freq, inv_freq])        # (rotary_dim,)
    # (tpr, W): row t carries inv_freq2 in token-t's lanes, zero elsewhere.
    eye = jnp.eye(tpr, dtype=jnp.float32)
    inv_freq_mask = (eye[:, :, None] * inv_freq2[None, None, :]).reshape(tpr, lane_w)
    # Phase: 0 for the sin half, pi/2 for the cos half, tiled per packed token.
    phase_tok = jnp.concatenate([jnp.zeros((half,), jnp.float32),
                                 jnp.full((half,), math.pi / 2, jnp.float32)])
    phase = jnp.tile(phase_tok, tpr).reshape(1, lane_w)

    out = pl.pallas_call(
        _rotary_kernel,
        out_shape=jax.ShapeDtypeStruct((n_rows_pad, lane_w), jnp.float32),
        grid=(n_rows_pad // tile_rows,),
        in_specs=[
            pl.BlockSpec((tile_rows, tpr), lambda i: (i, 0)),   # packed ids
            pl.BlockSpec((tpr, lane_w), lambda i: (0, 0)),      # resident constant
            pl.BlockSpec((1, lane_w), lambda i: (0, 0)),        # resident constant
        ],
        out_specs=pl.BlockSpec((tile_rows, lane_w), lambda i: (i, 0)),
        compiler_params=pltpu.CompilerParams(
            dimension_semantics=("parallel",)),   # disjoint blocks; v7x: 2 TCs
    )(ids_packed, inv_freq_mask, phase)

    # Row-major bytes of (n_rows_pad, W) are already token-major: free reshape.
    return out.reshape(-1, rotary_dim)[:n].reshape(*orig_shape, rotary_dim)


if __name__ == "__main__":
    rotary_dim = 32
    max_position = 128        # small, consistent with module semantics
    key = jax.random.PRNGKey(0)
    table = build_rotary_table(rotary_dim, rotary_base=10000,
                               max_position=max_position)

    # Test 1: module-like small shape (batch=2, seq=8), single grid step.
    pids1 = jax.random.randint(key, (2, 8), 0, max_position, dtype=jnp.int32)
    out1 = jax.block_until_ready(
        rotary_positional_embedding(pids1, rotary_dim=rotary_dim))
    ref1 = jnp.take(table, pids1, axis=0)
    assert out1.shape == (2, 8, rotary_dim)
    assert jnp.allclose(out1, ref1, atol=1e-4, rtol=1e-4), \
        float(jnp.max(jnp.abs(out1 - ref1)))

    # Test 2: length not a multiple of the tile -> padded tail + multi-step grid.
    pids2 = jax.random.randint(jax.random.PRNGKey(0), (1, 300), 0, max_position,
                               dtype=jnp.int32)
    out2 = jax.block_until_ready(
        rotary_positional_embedding(pids2, rotary_dim=rotary_dim, tile_rows=16))
    ref2 = jnp.take(table, pids2, axis=0)
    assert out2.shape == (1, 300, rotary_dim)
    assert jnp.allclose(out2, ref2, atol=1e-4, rtol=1e-4), \
        float(jnp.max(jnp.abs(out2 - ref2)))

    # TODO(synk): nn.Embedding raises on position_ids >= max_position; this
    # recompute-based kernel silently returns sin/cos of such positions.
    print("KERNEL_OK")
</pallas_src>

<mosaic_0001>
module attributes {stable_mosaic.version = 11 : i64} {
  func.func @_rotary_kernel(%arg0: i32, %arg1: memref<8x4xi32, #tpu.memory_space<vmem>>, %arg2: memref<4x128xf32, #tpu.memory_space<vmem>>, %arg3: memref<1x128xf32, #tpu.memory_space<vmem>>, %arg4: memref<8x128xf32, #tpu.memory_space<vmem>>) attributes {dimension_semantics = [#tpu.dimension_semantics<parallel>], iteration_bounds = array<i64: 1>, scalar_prefetch = 0 : i64, scratch_operands = 0 : i64, tpu.core_type = #tpu.core_type<tc>, window_params = [{transform_indices = @transform_0, window_bounds = array<i64: 8, 4>}, {pipeline_mode = #tpu.pipeline_mode<synchronous>, transform_indices = @transform_1, window_bounds = array<i64: 4, 128>}, {pipeline_mode = #tpu.pipeline_mode<synchronous>, transform_indices = @transform_2, window_bounds = array<i64: 1, 128>}, {transform_indices = @transform_3, window_bounds = array<i64: 8, 128>}]} {
    %c0 = arith.constant 0 : index
    %c0_0 = arith.constant 0 : index
    %0 = vector.load %arg1[%c0, %c0_0] : memref<8x4xi32, #tpu.memory_space<vmem>>, vector<8x4xi32>
    %1 = arith.sitofp %0 : vector<8x4xi32> to vector<8x4xf32>
    %c0_1 = arith.constant 0 : index
    %c0_2 = arith.constant 0 : index
    %2 = vector.load %arg2[%c0_1, %c0_2] : memref<4x128xf32, #tpu.memory_space<vmem>>, vector<4x128xf32>
    %c0_3 = arith.constant 0 : index
    %c0_4 = arith.constant 0 : index
    %3 = vector.load %arg3[%c0_3, %c0_4] : memref<1x128xf32, #tpu.memory_space<vmem>>, vector<1x128xf32>
    %4 = vector.extract_strided_slice %1 {offsets = [0, 0], sizes = [8, 1], strides = [1, 1]} : vector<8x4xf32> to vector<8x1xf32>
    %5 = vector.extract_strided_slice %2 {offsets = [0, 0], sizes = [1, 128], strides = [1, 1]} : vector<4x128xf32> to vector<1x128xf32>
    %6 = vector.broadcast %4 : vector<8x1xf32> to vector<8x128xf32>
    %7 = vector.broadcast %5 : vector<1x128xf32> to vector<8x128xf32>
    %8 = arith.mulf %6, %7 : vector<8x128xf32>
    %9 = vector.broadcast %3 : vector<1x128xf32> to vector<8x128xf32>
    %10 = arith.addf %9, %8 : vector<8x128xf32>
    %11 = vector.extract_strided_slice %1 {offsets = [0, 1], sizes = [8, 1], strides = [1, 1]} : vector<8x4xf32> to vector<8x1xf32>
    %12 = vector.extract_strided_slice %2 {offsets = [1, 0], sizes = [1, 128], strides = [1, 1]} : vector<4x128xf32> to vector<1x128xf32>
    %13 = vector.broadcast %11 : vector<8x1xf32> to vector<8x128xf32>
    %14 = vector.broadcast %12 : vector<1x128xf32> to vector<8x128xf32>
    %15 = arith.mulf %13, %14 : vector<8x128xf32>
    %16 = arith.addf %10, %15 : vector<8x128xf32>
    %17 = vector.extract_strided_slice %1 {offsets = [0, 2], sizes = [8, 1], strides = [1, 1]} : vector<8x4xf32> to vector<8x1xf32>
    %18 = vector.extract_strided_slice %2 {offsets = [2, 0], sizes = [1, 128], strides = [1, 1]} : vector<4x128xf32> to vector<1x128xf32>
    %19 = vector.broadcast %17 : vector<8x1xf32> to vector<8x128xf32>
    %20 = vector.broadcast %18 : vector<1x128xf32> to vector<8x128xf32>
    %21 = arith.mulf %19, %20 : vector<8x128xf32>
    %22 = arith.addf %16, %21 : vector<8x128xf32>
    %23 = vector.extract_strided_slice %1 {offsets = [0, 3], sizes = [8, 1], strides = [1, 1]} : vector<8x4xf32> to vector<8x1xf32>
    %24 = vector.extract_strided_slice %2 {offsets = [3, 0], sizes = [1, 128], strides = [1, 1]} : vector<4x128xf32> to vector<1x128xf32>
    %25 = vector.broadcast %23 : vector<8x1xf32> to vector<8x128xf32>
    %26 = vector.broadcast %24 : vector<1x128xf32> to vector<8x128xf32>
    %27 = arith.mulf %25, %26 : vector<8x128xf32>
    %28 = arith.addf %22, %27 : vector<8x128xf32>
    %29 = math.sin %28 : vector<8x128xf32>
    %c0_5 = arith.constant 0 : index
    %c0_6 = arith.constant 0 : index
    %30 = vector.load %arg4[%c0_5, %c0_6] : memref<8x128xf32, #tpu.memory_space<vmem>>, vector<8x128xf32>
    tpu.vector_store %arg4[%c0_5, %c0_6], %29 {strides = array<i32>} : memref<8x128xf32, #tpu.memory_space<vmem>>, vector<8x128xf32>,
    return
  }
  func.func @transform_0(%arg0: i32) -> (i32, i32) {
    %c0_i32 = arith.constant 0 : i32
    %c0_i32_0 = arith.constant 0 : i32
    return %arg0, %c0_i32 : i32, i32
  }
  func.func @transform_1(%arg0: i32) -> (i32, i32) {
    %c0_i32 = arith.constant 0 : i32
    %c0_i32_0 = arith.constant 0 : i32
    %c0_i32_1 = arith.constant 0 : i32
    return %c0_i32, %c0_i32_0 : i32, i32
  }
  func.func @transform_2(%arg0: i32) -> (i32, i32) {
    %c0_i32 = arith.constant 0 : i32
    %c0_i32_0 = arith.constant 0 : i32
    %c0_i32_1 = arith.constant 0 : i32
    return %c0_i32, %c0_i32_0 : i32, i32
  }
  func.func @transform_3(%arg0: i32) -> (i32, i32) {
    %c0_i32 = arith.constant 0 : i32
    %c0_i32_0 = arith.constant 0 : i32
    return %arg0, %c0_i32 : i32, i32
  }
}

</mosaic_0001>

<llo_original>
// kernel: tpu_custom_call.1
$region0: #{tpu_custom_call.1}
  #allocation0 [shape = 'u32[]', space=smem, size = 0x4, offset = 0x4, fixed_abs, tag = 'smem constant byte address 0x4 - core index']
  #allocation1 [shape = 'u32[144,128]{1,0:T(1,128)}', space=vmem, size = 0x12000, scoped, tag = 'internal scratch']
  %s0 = inlined_call_operand.vmem [shape: s32[8,4], index: 0, kind: input, shape index: {}]
  %s1 = inlined_call_operand.vmem [shape: f32[4,128], index: 1, kind: input, shape index: {}]
  %s2 = inlined_call_operand.vmem [shape: f32[1,128], index: 2, kind: input, shape index: {}]
  %s3 = inlined_call_operand.hbm [shape: f32[8,128], index: 3, kind: output, shape index: {}]
  %s4 = sld [smem:[#allocation0]]
  $region22: #{tpu_custom_call.1} parent=0
    _
  %s6 = ssub.s32 1, %s4
  %s7 = scalar_select 0, %s6, %s4
  $region1: #{tpu_custom_call.1} parent=0
    #allocation2 [shape = 'u8[4096]{0}', space=vmem, size = 0x1000, scoped, tag = 'output window, operand 0, single buffered']
    #allocation3 [shape = 's32[1]{0}', space=sflag, size = 0x4, scoped, tag = 'scoped memory for tpu_custom_call.1']
    %8 = vsyncpa [#allocation3], 0
    // Predicated region
    $region2: #{tpu_custom_call.1} parent=1 // pred_check
      _
    $region3: #{tpu_custom_call.1} parent=1 // pred_check_branch
      %10 = sbr.rel (0) target = $region5
    $region4: #{tpu_custom_call.1} parent=1 // pred_region
      _
    $region5: #{tpu_custom_call.1} parent=1 // pred_fallthru
      _
    // Predicated region
    $region6: #{tpu_custom_call.1} parent=1 // pred_check
      _
    $region7: #{tpu_custom_call.1} parent=1 // pred_check_branch
      %12 = sbr.rel (0) target = $region9
    $region8: #{tpu_custom_call.1} parent=1 // pred_region
      _
    $region9: #{tpu_custom_call.1} parent=1 // pred_fallthru
      _
    // Predicated region
    $region10: #{tpu_custom_call.1} parent=1 // pred_check
      _
    $region11: #{tpu_custom_call.1} parent=1 // pred_check_branch
      %14 = sbr.rel (0) target = $region13
    $region12: #{tpu_custom_call.1} parent=1 // pred_region
      _
    $region13: #{tpu_custom_call.1} parent=1 // pred_fallthru
      _
    %v15 = vld [vmem:[%s0] sm:$0xff]
    %v16 = vcvt.s32.f32 %v15
    %v17 = vld [vmem:[%s1] sm:$0xf]
    %v18 = vld [vmem:[%s2] sm:$0x1]
    %20 = vset.pattern.permute.xlu0 0
    %21 = vperm.xlu0 %20, %v16
    %v22 = vpop.permute.xlu0 %21
    %v24 = vlaneseq
    %v25 = vshrl.u32 %v24, 7
    %v26 = vsub.s32 0, %v25
    %v27 = vrot.slane %v17, %v26
    %v28 = vmul.f32 %v22, %v27
    %v30 = vlaneseq
    %v31 = vshrl.u32 %v30, 7
    %v32 = vsub.s32 0, %v31
    %v33 = vrot.slane %v18, %v32
    %v35 = vadd.f32 %v33, %v28
    %36 = vset.pattern.permute.xlu0 1
    %37 = vperm.xlu0 %36, %v16
    %v38 = vpop.permute.xlu0 %37
    %v40 = vlaneseq
    %v41 = vshrl.u32 %v40, 7
    %v42 = vsub.s32 1, %v41
    %v43 = vrot.slane %v17, %v42
    %v44 = vmul.f32 %v38, %v43
    %v45 = vadd.f32 %v35, %v44
    %46 = vset.pattern.permute.xlu0 2
    %47 = vperm.xlu0 %46, %v16
    %v48 = vpop.permute.xlu0 %47
    %v50 = vlaneseq
    %v51 = vshrl.u32 %v50, 7
    %v52 = vsub.s32 2, %v51
    %v53 = vrot.slane %v17, %v52
    %v54 = vmul.f32 %v48, %v53
    %v55 = vadd.f32 %v45, %v54
    %56 = vset.pattern.permute.xlu0 3
    %57 = vperm.xlu0 %56, %v16
    %v58 = vpop.permute.xlu0 %57
    %v60 = vlaneseq
    %v61 = vshrl.u32 %v60, 7
    %v62 = vsub.s32 3, %v61
    %v63 = vrot.slane %v17, %v62
    %v64 = vmul.f32 %v58, %v63
    %v65 = vadd.f32 %v55, %v64
    %v66 = vand.u32 2147483647, %v65
    %vm67 = vcmp.le.f32.partialorder %v66, 0.7853982
    %vm68 = vcmp.lt.s32.totalorder %v65, 0
    %v69 = vand.u32 %v65, 2139095040
    %v70 = vshrl.u32 %v69, 23
    %v71 = vsub.s32 %v70, 127
    %v72 = vand.u32 2147483647, %v65
    %v73 = vand.u32 %v72, 8388607
    %v74 = vor.u32 %v73, 8388608
    %v75 = vsub.s32 0, %v74
    %v76 = vadd.s32 %v71, 1
    %vm77 = vcmp.gt.s32.totalorder %v76, 0
    %v78 = vsel %vm77, %v76, 0
    %v79 = vshrl.u32 %v78, 5
    %v80 = vand.u32 %v78, 31
    %v81 = vsub.s32 32, %v80
    %v82 = vshrl.u32 683565275, %v81
    %v83 = vshll.u32 683565275, %v80
    %v84 = vshrl.u32 2475754826, %v81
    %v85 = vor.u32 %v83, %v84
    %v86 = vshll.u32 2475754826, %v80
    %v87 = vshrl.u32 2131351028, %v81
    %v88 = vor.u32 %v86, %v87
    %v89 = vshll.u32 2131351028, %v80
    %v90 = vshrl.u32 2102212464, %v81
    %v91 = vor.u32 %v89, %v90
    %v92 = vshll.u32 2102212464, %v80
    %v93 = vshrl.u32 920167782, %v81
    %v94 = vor.u32 %v92, %v93
    %v95 = vshll.u32 920167782, %v80
    %v96 = vshrl.u32 1326507024, %v81
    %v97 = vor.u32 %v95, %v96
    %vm98 = vcmp.lt.s32.totalorder %v79, 1
    %vm99 = vcmp.lt.s32.totalorder %v79, 2
    %vm100 = vcmp.lt.s32.totalorder %v79, 3
    %vm101 = vcmp.lt.s32.totalorder %v79, 4
    %v102 = vsel %vm98, %v82, %v85
    %v103 = vsel %vm101, %v91, 2102212464
    %v104 = vsel %vm100, %v88, %v103
    %v105 = vsel %vm99, %v102, %v104
    %v106 = vsel %vm98, %v85, %v88
    %v107 = vsel %vm101, %v94, 920167782
    %v108 = vsel %vm100, %v91, %v107
    %v109 = vsel %vm99, %v106, %v108
    %v110 = vsel %vm98, %v88, %v91
    %v111 = vsel %vm101, %v97, 1326507024
    %v112 = vsel %vm100, %v94, %v111
    %v113 = vsel %vm99, %v110, %v112
    %v114 = vshll.u32 %v74, 8
    %v115 = vmul.u32.u64.compose %v114, %v113
    %v116 = vextract.low.u32 %v115
    %v117 = vextract.high.u32 %v115
    %v118 = vmul.u32.u64.compose %v114, %v109
    %v119 = vextract.low.u32 %v118
    %v120 = vextract.high.u32 %v118
    %v121 = vmul.u32 %v114, %v105
    %v122 = vadd.s32 %v117, %v119
    %vm123 = vc.u32 %v117, %v119
    %v124 = vadd.s32 %v120, 1
    %v125 = vsel %vm123, %v124, %v120
    %v126 = vadd.s32 %v121, %v125
    %v127 = vadd.s32 %v126, 536870912
    %v128 = vshrl.u32 %v127, 30
    %v129 = vshll.u32 %v128, 30
    %v130 = vsub.s32 %v126, %v129
    %vm131 = vcmp.lt.s32.totalorder %v130, 0
    %v132 = vsub.s32 0, %v130
    %v133 = vsel %vm131, %v132, %v130
    %v134 = vclz %v133
    %v135 = vsub.s32 %v134, 2
    %vm136 = vcmp.gt.s32.totalorder 0, %v135
    %v137 = vsel %vm136, 0, %v135
    %v138 = vsub.s32 32, %v137
    %v139 = vshll.u32 %v130, %v137
    %v140 = vshrl.u32 %v122, %v138
    %v141 = vor.u32 %v139, %v140
    %v142 = vsub.s32 4294967266, %v137
    %v143 = vadd.s32 %v142, 127
    %v144 = vshll.u32 %v143, 23
    %v145 = vor.u32 4788187, %v144
    %v146 = vand.u32 2147483647, %v145
    %v148 = vcvt.s32.f32 %v141
    %v149 = vmul.f32 %v148, %v146
    %v150 = vxor.u32 %v149, 2147483648
    %v151 = vsel %vm68, %v150, %v149
    %v152 = vsub.s32 4, %v128
    %v153 = vsel %vm68, %v152, %v128
    %v154 = vsel %vm67, %v65, %v151
    %v155 = vsel %vm67, 0, %v153
    %v156 = vcosq.f32.pop %v154
    %v157 = vsinq.f32.pop %v154
    %vm158 = vweird.f32 %v65
    %v159 = vadd.s32 %v155, 3
    %v160 = vand.u32 %v159, 3
    %vm161 = vcmp.lt.s32.totalorder %v160, 2
    %vm162 = vcmp.eq.s32.totalorder %v160, 0
    %v163 = vxor.u32 %v157, 2147483648
    %v164 = vsel %vm162, %v156, %v163
    %vm165 = vcmp.eq.s32.totalorder %v160, 2
    %v166 = vxor.u32 %v156, 2147483648
    %v167 = vsel %vm165, %v166, %v157
    %v168 = vsel %vm161, %v164, %v167
    %v169 = vsel %vm158, nan, %v168
    %170 = vst [vmem:[#allocation2] sm:$0xff] %v169
    // Predicated region
    $region14: #{tpu_custom_call.1} parent=1 // pred_check
      _
    $region15: #{tpu_custom_call.1} parent=1 // pred_check_branch
      %172 = sbr.rel (0) target = $region17
    $region16: #{tpu_custom_call.1} parent=1 // pred_region
      %s174 = ssub.s32 128, 128
      %175 = vsyncadd [#allocation3], %s174
      %s177 = sshll.u32 [#allocation2], 4
      %s178 = int_to_ptr.vmem [resolvable:$true] %s177
      %180 = dma.vmem_to_hbm [thread:$0]  %s178, 128, %s3, [#allocation3]
    $region17: #{tpu_custom_call.1} parent=1 // pred_fallthru
      _
    // Predicated region
    $region18: #{tpu_custom_call.1} parent=1 // pred_check
      _
    $region19: #{tpu_custom_call.1} parent=1 // pred_check_branch
      %182 = sbr.rel (0) target = $region21
    $region20: #{tpu_custom_call.1} parent=1 // pred_region
      %183 = dma.done [#allocation3], 128
    $region21: #{tpu_custom_call.1} parent=1 // pred_fallthru
      _
    %184 = vsyncpa [#allocation3], 1

</llo_original>
